<compile_context>
chip_gen: v5e
topology: v5e:2x2
jax: 0.10.0
libtpu: 0.0.40
codegen_flags: <defaults>
</compile_context>

<pallas_src>
import math

import jax
import jax.numpy as jnp
from jax.experimental import pallas as pl
from jax.experimental.pallas import tpu as pltpu


def _flow_fwd_kernel(x_ref, m_ref, e_ref, scales_ref, shifts_ref, ls_sum_ref,
                     y_ref, ljd_ref):
    """Fused masked-affine chain on a lane-dense (tile_b, r*D) slab.

    x_ref:      (tile_b, Dr)   input slab (streamed), Dr = r*D
    m_ref:      (tile_b, r)    mask, one value per original batch row (streamed)
    e_ref:      (r, Dr)        block-diagonal 0/1 expansion matrix (resident)
    scales_ref: (K, 1, Dr)     exp(log_scale) per transform, r-tiled (resident)
    shifts_ref: (K, 1, Dr)     shift per transform, r-tiled (resident)
    ls_sum_ref: (1, Dr)        sum_k log_scale_k, r-tiled (resident)
    """
    x = x_ref[...].astype(jnp.float32)                       # (tb, Dr)

    if e_ref.shape[0] == 1:
        # r == 1 (D is already a lane multiple): one mask value per row,
        # broadcast across lanes directly.
        m = m_ref[...]                                        # (tb, 1)
    else:
        # Expand the (tb, r) row-group mask to (tb, r*D) with a tiny
        # block-diagonal matmul on the otherwise-idle MXU.
        m = jnp.dot(m_ref[...], e_ref[...],
                    preferred_element_type=jnp.float32)       # (tb, Dr)

    # log_jac_diag = mask * sum_k log_scale_k  (each Affine's ld is its
    # log_scale, independent of x) -> single multiply instead of K accumulates.
    ljd_ref[...] = (ls_sum_ref[...] * m).astype(ljd_ref.dtype)

    num_transforms = scales_ref.shape[0]                      # static, small
    for k in range(num_transforms):                           # K small: unroll
        # (1, Dr) params -> native sublane broadcast against (tb, Dr).
        x = (x * m) * scales_ref[k] + shifts_ref[k]

    y_ref[...] = x.astype(y_ref.dtype)


def _vmem_capacity_bytes():
    try:
        return int(pltpu.get_tpu_info().vmem_capacity_bytes)
    except Exception:
        return 64 << 20        # conservative default (v7x per-core VMEM)


def _choose_tile_b(n_rows, bytes_per_row_streamed, budget_bytes):
    """Largest multiple-of-8 row tile whose double-buffered streams fit the
    VMEM budget; capped at ~half the rows so v7x's two TensorCores both get
    work on large inputs (grid >= 2)."""
    tile = budget_bytes // max(2 * bytes_per_row_streamed, 1)   # x2: dbl-buffer
    tile = max(8, (tile // 8) * 8)
    half = ((-(-n_rows // 2) + 7) // 8) * 8
    tile = min(tile, half)
    return n_rows if tile >= n_rows else tile


def flow_forward(x, mask, log_scales, shifts, *, tile_b=None):
    """Flow.forward (reverse=False) for a stack of K Affine transforms.

    Args:
      x:          (B, D) input.
      mask:       (B, 1) mask, or None (treated as all-ones, matching `_mask = 1`).
      log_scales: (K, D) stacked per-transform log-scale params.
      shifts:     (K, D) stacked per-transform shift params.

    Returns:
      y:            (B, D)
      log_jac_diag: (B, D)
    """
    B, D = x.shape
    K = log_scales.shape[0]
    out_dtype = x.dtype
    in_sz = jnp.dtype(x.dtype).itemsize
    out_sz = jnp.dtype(out_dtype).itemsize

    if mask is None:
        mask = jnp.ones((B, 1), dtype=jnp.float32)

    # --- Lane-dense layout WITHOUT transposes or pads -------------------------
    # Group r consecutive batch rows so the free row-major reshape
    # (B, D) -> (B//r, r*D) puts a multiple of 128 on the lane axis.
    if D % 128 == 0:
        r = 1
    else:
        r = 128 // math.gcd(D, 128)
        if B % r != 0:
            r = 1   # fallback: full-D lanes (partially filled vregs, correct)
    Dr = r * D
    Br = B // r

    xr = x.reshape(Br, Dr)                                    # free view
    mr = jnp.asarray(mask).astype(jnp.float32).reshape(Br, r)  # tiny (B floats)

    # --- Hoisted, VMEM-resident parameter math (O(K * Dr) floats) ------------
    ls32 = log_scales.astype(jnp.float32)
    scales = jnp.tile(jnp.exp(ls32), (1, r)).reshape(K, 1, Dr)
    shifts32 = jnp.tile(shifts.astype(jnp.float32), (1, r)).reshape(K, 1, Dr)
    ls_sum = jnp.tile(jnp.sum(ls32, axis=0), (r,)).reshape(1, Dr)
    # Block-diagonal expansion: expand[j, j*D:(j+1)*D] = 1.
    expand = jnp.repeat(jnp.eye(r, dtype=jnp.float32), D, axis=1)   # (r, Dr)

    # --- Generation-aware tiling ----------------------------------------------
    vmem_cap = _vmem_capacity_bytes()
    bytes_per_row = Dr * (in_sz + 2 * out_sz) + r * 4          # x in + y,ljd out + mask
    if tile_b is None:
        tile_b = _choose_tile_b(Br, bytes_per_row, (vmem_cap * 3) // 4)
    grid_n = pl.cdiv(Br, tile_b)       # ragged last block: OOB writes discarded

    streamed = 2 * tile_b * bytes_per_row                      # double-buffered
    resident = 2 * Dr * 4 * (2 * K + 1 + r)
    vmem_limit = int(min(vmem_cap, max(32 << 20, streamed + resident + (4 << 20))))

    cost = pl.CostEstimate(
        flops=int(B * D * (3 * K + 1)),
        transcendentals=0,
        bytes_accessed=int(B * D * (in_sz + 2 * out_sz) + B * 4
                           + (2 * K + 1 + r) * Dr * 4),
    )

    yr, ljdr = pl.pallas_call(
        _flow_fwd_kernel,
        out_shape=(
            jax.ShapeDtypeStruct((Br, Dr), out_dtype),
            jax.ShapeDtypeStruct((Br, Dr), out_dtype),
        ),
        grid_spec=pltpu.PrefetchScalarGridSpec(
            num_scalar_prefetch=0,
            grid=(grid_n,),
            in_specs=[
                pl.BlockSpec((tile_b, Dr), lambda i: (i, 0)),     # x slab (streamed)
                pl.BlockSpec((tile_b, r), lambda i: (i, 0)),      # mask slab (streamed)
                pl.BlockSpec((r, Dr), lambda i: (0, 0)),          # expansion (resident)
                pl.BlockSpec((K, 1, Dr), lambda i: (0, 0, 0)),    # exp(ls) (resident)
                pl.BlockSpec((K, 1, Dr), lambda i: (0, 0, 0)),    # shifts (resident)
                pl.BlockSpec((1, Dr), lambda i: (0, 0)),          # sum ls (resident)
            ],
            out_specs=[
                pl.BlockSpec((tile_b, Dr), lambda i: (i, 0)),
                pl.BlockSpec((tile_b, Dr), lambda i: (i, 0)),
            ],
        ),
        compiler_params=pltpu.CompilerParams(
            dimension_semantics=("parallel",),
            vmem_limit_bytes=vmem_limit,
        ),
        cost_estimate=cost,
    )(xr, mr, expand, scales, shifts32, ls_sum)

    return yr.reshape(B, D), ljdr.reshape(B, D)                 # free views


def flow_forward_ref(x, mask, log_scales, shifts):
    """Pure-JAX reference mirroring the PyTorch Flow.forward loop."""
    _mask = jnp.ones((x.shape[0], 1), x.dtype) if mask is None else mask
    ljd = jnp.zeros_like(x)
    for k in range(log_scales.shape[0]):
        ls = log_scales[k][None, :]
        sh = shifts[k][None, :]
        x = (x * _mask) * jnp.exp(ls) + sh
        ljd = ljd + ls * _mask
    return x, ljd


if __name__ == "__main__":
    key = jax.random.PRNGKey(0)
    k_x, k_m, k_ls, k_sh = jax.random.split(key, 4)

    # Small shapes consistent with the module: x has shape (..., dim).
    B, D, K = 256, 32, 3          # batch=256, dim=32, 3 stacked Affine transforms
    x = jax.random.normal(k_x, (B, D), dtype=jnp.float32)
    mask = (jax.random.uniform(k_m, (B, 1)) > 0.2).astype(jnp.float32)
    log_scales = 0.1 * jax.random.normal(k_ls, (K, D), dtype=jnp.float32)
    shifts = 0.1 * jax.random.normal(k_sh, (K, D), dtype=jnp.float32)

    y, ljd = flow_forward(x, mask, log_scales, shifts)
    jax.block_until_ready((y, ljd))
    y_ref, ljd_ref = flow_forward_ref(x, mask, log_scales, shifts)
    assert jnp.allclose(y, y_ref, atol=1e-5, rtol=1e-5)
    assert jnp.allclose(ljd, ljd_ref, atol=1e-5, rtol=1e-5)

    # mask=None (the `_mask = 1` branch).
    y2, ljd2 = flow_forward(x, None, log_scales, shifts)
    jax.block_until_ready((y2, ljd2))
    y2_ref, ljd2_ref = flow_forward_ref(x, None, log_scales, shifts)
    assert jnp.allclose(y2, y2_ref, atol=1e-5, rtol=1e-5)
    assert jnp.allclose(ljd2, ljd2_ref, atol=1e-5, rtol=1e-5)

    # D already a lane multiple -> native (r == 1) path.
    D2 = 128
    x3 = jax.random.normal(k_x, (64, D2), dtype=jnp.float32)
    m3 = (jax.random.uniform(k_m, (64, 1)) > 0.5).astype(jnp.float32)
    ls3 = 0.1 * jax.random.normal(k_ls, (K, D2), dtype=jnp.float32)
    sh3 = 0.1 * jax.random.normal(k_sh, (K, D2), dtype=jnp.float32)
    y3, ljd3 = flow_forward(x3, m3, ls3, sh3)
    jax.block_until_ready((y3, ljd3))
    y3_ref, ljd3_ref = flow_forward_ref(x3, m3, ls3, sh3)
    assert jnp.allclose(y3, y3_ref, atol=1e-5, rtol=1e-5)
    assert jnp.allclose(ljd3, ljd3_ref, atol=1e-5, rtol=1e-5)

    # Ragged row count (no pad: Pallas partial last block, OOB writes dropped).
    B4 = 40
    x4 = jax.random.normal(k_x, (B4, D), dtype=jnp.float32)
    m4 = (jax.random.uniform(k_m, (B4, 1)) > 0.3).astype(jnp.float32)
    y4, ljd4 = flow_forward(x4, m4, log_scales, shifts)
    jax.block_until_ready((y4, ljd4))
    y4_ref, ljd4_ref = flow_forward_ref(x4, m4, log_scales, shifts)
    assert jnp.allclose(y4, y4_ref, atol=1e-5, rtol=1e-5)
    assert jnp.allclose(ljd4, ljd4_ref, atol=1e-5, rtol=1e-5)

    # TODO(synk): base_dist.log_prob / rsample (log_prob & sample methods) and
    # the reverse=True inverse path are distribution/control glue, not a kernel
    # hot path; not implemented here.
    print("KERNEL_OK")
</pallas_src>

<mosaic_0001>
module attributes {stable_mosaic.version = 11 : i64} {
  func.func @_flow_fwd_kernel(%arg0: i32, %arg1: memref<32x128xf32, #tpu.memory_space<vmem>>, %arg2: memref<32x4xf32, #tpu.memory_space<vmem>>, %arg3: memref<4x128xf32, #tpu.memory_space<vmem>>, %arg4: memref<3x1x128xf32, #tpu.memory_space<vmem>>, %arg5: memref<3x1x128xf32, #tpu.memory_space<vmem>>, %arg6: memref<1x128xf32, #tpu.memory_space<vmem>>, %arg7: memref<32x128xf32, #tpu.memory_space<vmem>>, %arg8: memref<32x128xf32, #tpu.memory_space<vmem>>) attributes {dimension_semantics = [#tpu.dimension_semantics<parallel>], iteration_bounds = array<i64: 2>, scalar_prefetch = 0 : i64, scratch_operands = 0 : i64, tpu.core_type = #tpu.core_type<tc>, window_params = [{transform_indices = @transform_0, window_bounds = array<i64: 32, 128>}, {transform_indices = @transform_1, window_bounds = array<i64: 32, 4>}, {pipeline_mode = #tpu.pipeline_mode<synchronous>, transform_indices = @transform_2, window_bounds = array<i64: 4, 128>}, {pipeline_mode = #tpu.pipeline_mode<synchronous>, transform_indices = @transform_3, window_bounds = array<i64: 3, 1, 128>}, {pipeline_mode = #tpu.pipeline_mode<synchronous>, transform_indices = @transform_4, window_bounds = array<i64: 3, 1, 128>}, {pipeline_mode = #tpu.pipeline_mode<synchronous>, transform_indices = @transform_5, window_bounds = array<i64: 1, 128>}, {transform_indices = @transform_6, window_bounds = array<i64: 32, 128>}, {transform_indices = @transform_7, window_bounds = array<i64: 32, 128>}]} {
    %c0 = arith.constant 0 : index
    %c0_0 = arith.constant 0 : index
    %0 = vector.load %arg1[%c0, %c0_0] : memref<32x128xf32, #tpu.memory_space<vmem>>, vector<32x128xf32>
    %c0_1 = arith.constant 0 : index
    %c0_2 = arith.constant 0 : index
    %1 = vector.load %arg2[%c0_1, %c0_2] : memref<32x4xf32, #tpu.memory_space<vmem>>, vector<32x4xf32>
    %c0_3 = arith.constant 0 : index
    %c0_4 = arith.constant 0 : index
    %2 = vector.load %arg3[%c0_3, %c0_4] : memref<4x128xf32, #tpu.memory_space<vmem>>, vector<4x128xf32>
    %cst = arith.constant dense<0.000000e+00> : vector<32x128xf32>
    %3 = tpu.matmul %1, %2, %cst {dimension_numbers = #tpu.dot_dimension_numbers<[1], [0], [0], [1], [0, 0, 1, 1], [], []>} : vector<32x4xf32>, vector<4x128xf32>, vector<32x128xf32> -> vector<32x128xf32>
    %c0_5 = arith.constant 0 : index
    %c0_6 = arith.constant 0 : index
    %4 = vector.load %arg6[%c0_5, %c0_6] : memref<1x128xf32, #tpu.memory_space<vmem>>, vector<1x128xf32>
    %5 = vector.broadcast %4 : vector<1x128xf32> to vector<32x128xf32>
    %6 = arith.mulf %5, %3 : vector<32x128xf32>
    %c0_7 = arith.constant 0 : index
    %c0_8 = arith.constant 0 : index
    %7 = vector.load %arg8[%c0_7, %c0_8] : memref<32x128xf32, #tpu.memory_space<vmem>>, vector<32x128xf32>
    tpu.vector_store %arg8[%c0_7, %c0_8], %6 {strides = array<i32>} : memref<32x128xf32, #tpu.memory_space<vmem>>, vector<32x128xf32>,
    %8 = arith.mulf %0, %3 : vector<32x128xf32>
    %c0_9 = arith.constant 0 : index
    %c0_10 = arith.constant 0 : index
    %c0_11 = arith.constant 0 : index
    %9 = vector.load %arg4[%c0_9, %c0_10, %c0_11] : memref<3x1x128xf32, #tpu.memory_space<vmem>>, vector<1x1x128xf32>
    %10 = vector.shape_cast %9 : vector<1x1x128xf32> to vector<1x128xf32>
    %11 = vector.broadcast %10 : vector<1x128xf32> to vector<32x128xf32>
    %12 = arith.mulf %8, %11 : vector<32x128xf32>
    %c0_12 = arith.constant 0 : index
    %c0_13 = arith.constant 0 : index
    %c0_14 = arith.constant 0 : index
    %13 = vector.load %arg5[%c0_12, %c0_13, %c0_14] : memref<3x1x128xf32, #tpu.memory_space<vmem>>, vector<1x1x128xf32>
    %14 = vector.shape_cast %13 : vector<1x1x128xf32> to vector<1x128xf32>
    %15 = vector.broadcast %14 : vector<1x128xf32> to vector<32x128xf32>
    %16 = arith.addf %12, %15 : vector<32x128xf32>
    %17 = arith.mulf %16, %3 : vector<32x128xf32>
    %c1 = arith.constant 1 : index
    %c0_15 = arith.constant 0 : index
    %c0_16 = arith.constant 0 : index
    %18 = vector.load %arg4[%c1, %c0_15, %c0_16] : memref<3x1x128xf32, #tpu.memory_space<vmem>>, vector<1x1x128xf32>
    %19 = vector.shape_cast %18 : vector<1x1x128xf32> to vector<1x128xf32>
    %20 = vector.broadcast %19 : vector<1x128xf32> to vector<32x128xf32>
    %21 = arith.mulf %17, %20 : vector<32x128xf32>
    %c1_17 = arith.constant 1 : index
    %c0_18 = arith.constant 0 : index
    %c0_19 = arith.constant 0 : index
    %22 = vector.load %arg5[%c1_17, %c0_18, %c0_19] : memref<3x1x128xf32, #tpu.memory_space<vmem>>, vector<1x1x128xf32>
    %23 = vector.shape_cast %22 : vector<1x1x128xf32> to vector<1x128xf32>
    %24 = vector.broadcast %23 : vector<1x128xf32> to vector<32x128xf32>
    %25 = arith.addf %21, %24 : vector<32x128xf32>
    %26 = arith.mulf %25, %3 : vector<32x128xf32>
    %c2 = arith.constant 2 : index
    %c0_20 = arith.constant 0 : index
    %c0_21 = arith.constant 0 : index
    %27 = vector.load %arg4[%c2, %c0_20, %c0_21] : memref<3x1x128xf32, #tpu.memory_space<vmem>>, vector<1x1x128xf32>
    %28 = vector.shape_cast %27 : vector<1x1x128xf32> to vector<1x128xf32>
    %29 = vector.broadcast %28 : vector<1x128xf32> to vector<32x128xf32>
    %30 = arith.mulf %26, %29 : vector<32x128xf32>
    %c2_22 = arith.constant 2 : index
    %c0_23 = arith.constant 0 : index
    %c0_24 = arith.constant 0 : index
    %31 = vector.load %arg5[%c2_22, %c0_23, %c0_24] : memref<3x1x128xf32, #tpu.memory_space<vmem>>, vector<1x1x128xf32>
    %32 = vector.shape_cast %31 : vector<1x1x128xf32> to vector<1x128xf32>
    %33 = vector.broadcast %32 : vector<1x128xf32> to vector<32x128xf32>
    %34 = arith.addf %30, %33 : vector<32x128xf32>
    %c0_25 = arith.constant 0 : index
    %c0_26 = arith.constant 0 : index
    %35 = vector.load %arg7[%c0_25, %c0_26] : memref<32x128xf32, #tpu.memory_space<vmem>>, vector<32x128xf32>
    tpu.vector_store %arg7[%c0_25, %c0_26], %34 {strides = array<i32>} : memref<32x128xf32, #tpu.memory_space<vmem>>, vector<32x128xf32>,
    return
  }
  func.func @transform_0(%arg0: i32) -> (i32, i32) {
    %c0_i32 = arith.constant 0 : i32
    %c0_i32_0 = arith.constant 0 : i32
    return %arg0, %c0_i32 : i32, i32
  }
  func.func @transform_1(%arg0: i32) -> (i32, i32) {
    %c0_i32 = arith.constant 0 : i32
    %c0_i32_0 = arith.constant 0 : i32
    return %arg0, %c0_i32 : i32, i32
  }
  func.func @transform_2(%arg0: i32) -> (i32, i32) {
    %c0_i32 = arith.constant 0 : i32
    %c0_i32_0 = arith.constant 0 : i32
    %c0_i32_1 = arith.constant 0 : i32
    return %c0_i32, %c0_i32_0 : i32, i32
  }
  func.func @transform_3(%arg0: i32) -> (i32, i32, i32) {
    %c0_i32 = arith.constant 0 : i32
    %c0_i32_0 = arith.constant 0 : i32
    %c0_i32_1 = arith.constant 0 : i32
    %c0_i32_2 = arith.constant 0 : i32
    return %c0_i32, %c0_i32_0, %c0_i32_1 : i32, i32, i32
  }
  func.func @transform_4(%arg0: i32) -> (i32, i32, i32) {
    %c0_i32 = arith.constant 0 : i32
    %c0_i32_0 = arith.constant 0 : i32
    %c0_i32_1 = arith.constant 0 : i32
    %c0_i32_2 = arith.constant 0 : i32
    return %c0_i32, %c0_i32_0, %c0_i32_1 : i32, i32, i32
  }
  func.func @transform_5(%arg0: i32) -> (i32, i32) {
    %c0_i32 = arith.constant 0 : i32
    %c0_i32_0 = arith.constant 0 : i32
    %c0_i32_1 = arith.constant 0 : i32
    return %c0_i32, %c0_i32_0 : i32, i32
  }
  func.func @transform_6(%arg0: i32) -> (i32, i32) {
    %c0_i32 = arith.constant 0 : i32
    %c0_i32_0 = arith.constant 0 : i32
    return %arg0, %c0_i32 : i32, i32
  }
  func.func @transform_7(%arg0: i32) -> (i32, i32) {
    %c0_i32 = arith.constant 0 : i32
    %c0_i32_0 = arith.constant 0 : i32
    return %arg0, %c0_i32 : i32, i32
  }
}

</mosaic_0001>

<llo_original>
// kernel: tpu_custom_call.1
$region0: #{tpu_custom_call.1}
  #allocation0 [shape = 'u32[]', space=smem, size = 0x4, offset = 0x4, fixed_abs, tag = 'smem constant byte address 0x4 - core index']
  #allocation1 [shape = 'u32[72,128]{1,0:T(1,128)}', space=vmem, size = 0x9000, scoped, tag = 'internal scratch']
  %s0 = inlined_call_operand.vmem [shape: f32[64,128], index: 0, kind: input, shape index: {}]
  %s1 = inlined_call_operand.vmem [shape: f32[64,4], index: 1, kind: input, shape index: {}]
  %s2 = inlined_call_operand.vmem [shape: f32[4,128], index: 2, kind: input, shape index: {}]
  %s3 = inlined_call_operand.hbm [shape: f32[3,1,128], index: 3, kind: input, shape index: {}]
  %s4 = inlined_call_operand.vmem [shape: f32[3,1,128], index: 4, kind: input, shape index: {}]
  %s5 = inlined_call_operand.vmem [shape: f32[1,128], index: 5, kind: input, shape index: {}]
  %s6 = inlined_call_operand.hbm [shape: f32[64,128], index: 6, kind: output, shape index: {0}]
  %s7 = inlined_call_operand.hbm [shape: f32[64,128], index: 7, kind: output, shape index: {1}]
  %8 = xla_tuple %s6, %s7
  %s9 = sld [smem:[#allocation0]]
  $region69: #{tpu_custom_call.1} parent=0
    _
  %s11 = ssub.s32 1, %s9
  %s12 = scalar_select 0, %s11, %s9
  $region1: #{tpu_custom_call.1} parent=0
    #allocation2 [shape = 'u8[1536]{0}', space=vmem, size = 0x800, scoped, tag = 'input window, operand 3, single buffered']
    #allocation3 [shape = 's32[2]{0}', space=sflag, size = 0x8, scoped, tag = 'scoped memory for tpu_custom_call.1']
    #allocation4 [shape = 's32[2]{0}', space=sflag, size = 0x8, scoped, tag = 'scoped memory for tpu_custom_call.1']
    #allocation5 [shape = 'u8[32768]{0}', space=vmem, size = 0x8000, scoped, tag = 'output window, operand 0']
    #allocation6 [shape = 'u8[32768]{0}', space=vmem, size = 0x8000, scoped, tag = 'output window, operand 1']
    #allocation7 [shape = 's32[2]{0}', space=sflag, size = 0x8, scoped, tag = 'scoped memory for tpu_custom_call.1']
    %13 = vsyncpa [#allocation3], 0
    %14 = vsyncpa [#allocation4], 0
    %s15 = scalar_lea.sflag [#allocation4], 1
    %16 = vsyncpa %s15, 0
    %17 = vsyncpa [#allocation7], 0
    %s18 = scalar_lea.sflag [#allocation7], 1
    %19 = vsyncpa %s18, 0
    loop: start=0, step=1, limit=4
    $region2: #{tpu_custom_call.1} parent=1 // loop_pre_header
      _
    $region3: #{tpu_custom_call.1} parent=1 // loop_header
      %s21 = sphi 0, %s25
      %p22 = scmp.ge.s32.totalorder %s21, 4
      %s31 = sphi 0, %s33
      %s34 = sphi 0, %s31
      %s35 = sphi 0, %s34
      %s51 = sphi 0, %s35
      %s57 = sphi 0, %s59
      %s60 = sphi 0, %s57
      %s61 = sphi 0, %s60
      %s77 = sphi 0, %s61
      %s81 = sphi 0, %s81
      %s83 = sphi 0, %s81
      %s84 = sphi 0, %s83
      %s98 = sphi 0, %s84
      %s102 = sphi 0, %s102
      %s104 = sphi 0, %s102
      %s105 = sphi 0, %s104
      %s119 = sphi 0, %s105
      %s123 = sphi 0, %s123
      %s125 = sphi 0, %s123
      %s126 = sphi 0, %s125
      %s140 = sphi 0, %s126
      %s144 = sphi 0, %s144
      %s146 = sphi 0, %s144
      %s147 = sphi 0, %s146
      %s161 = sphi 0, %s147
      %s167 = sphi 0, %s169
      %s170 = sphi 0, %s167
      %s171 = sphi 0, %s170
      %s187 = sphi 0, %s171
      %s193 = sphi 0, %s195
      %s196 = sphi 0, %s193
      %s197 = sphi 0, %s196
      %s213 = sphi 0, %s197
    $region4: #{tpu_custom_call.1} parent=1 // loop_header_branch
      %24 = sbr.rel (%p22) target = $region8
    $region5: #{tpu_custom_call.1} parent=1 // loop_body
      %s26 = ssub.s32 %s21, 1
      %s27 = ssub.s32 %s21, 2
      %s28 = sadd.s32 %s21, 1
      %s29 = ssub.s32 %s21, %s28
      %p30 = scmp.eq.s32.totalorder %s29, 0
      %s32 = sadd.s32 %s31, 1
      %s33 = scalar_select %p30, %s31, %s32
      %p36 = pneg %p30
      %p37 = scmp.eq.s32.totalorder %s21, 1
      %p38 = por %p36, %p37
      %p39 = scmp.ne.s32.totalorder %s31, %s34
      %p40 = scmp.eq.s32.totalorder %s21, 0
      %p41 = por %p39, %p40
      %p42 = scmp.ne.s32.totalorder %s31, %s34
      %p43 = scmp.eq.s32.totalorder %s26, 1
      %p44 = por %p42, %p43
      %p45 = scmp.ne.s32.totalorder %s34, %s35
      %p46 = scmp.eq.s32.totalorder %s26, 0
      %p47 = por %p45, %p46
      %p48 = scmp.ne.s32.totalorder %s34, %s35
      %p49 = scmp.eq.s32.totalorder %s27, 1
      %p50 = por %p48, %p49
      %p52 = scmp.ne.s32.totalorder %s35, %s51
      %p53 = scmp.eq.s32.totalorder %s27, 0
      %p54 = por %p52, %p53
      %s55 = ssub.s32 %s21, %s28
      %p56 = scmp.eq.s32.totalorder %s55, 0
      %s58 = sadd.s32 %s57, 1
      %s59 = scalar_select %p56, %s57, %s58
      %p62 = pneg %p56
      %p63 = scmp.eq.s32.totalorder %s21, 1
      %p64 = por %p62, %p63
      %p65 = scmp.ne.s32.totalorder %s57, %s60
      %p66 = scmp.eq.s32.totalorder %s21, 0
      %p67 = por %p65, %p66
      %p68 = scmp.ne.s32.totalorder %s57, %s60
      %p69 = scmp.eq.s32.totalorder %s26, 1
      %p70 = por %p68, %p69
      %p71 = scmp.ne.s32.totalorder %s60, %s61
      %p72 = scmp.eq.s32.totalorder %s26, 0
      %p73 = por %p71, %p72
      %p74 = scmp.ne.s32.totalorder %s60, %s61
      %p75 = scmp.eq.s32.totalorder %s27, 1
      %p76 = por %p74, %p75
      %p78 = scmp.ne.s32.totalorder %s61, %s77
      %p79 = scmp.eq.s32.totalorder %s27, 0
      %p80 = por %p78, %p79
      %s82 = sadd.s32 %s81, 1
      %p85 = scmp.eq.s32.totalorder %s21, 1
      %p86 = scmp.ne.s32.totalorder %s81, %s83
      %p87 = scmp.eq.s32.totalorder %s21, 0
      %p88 = por %p86, %p87
      %p89 = scmp.ne.s32.totalorder %s81, %s83
      %p90 = scmp.eq.s32.totalorder %s26, 1
      %p91 = por %p89, %p90
      %p92 = scmp.ne.s32.totalorder %s83, %s84
      %p93 = scmp.eq.s32.totalorder %s26, 0
      %p94 = por %p92, %p93
      %p95 = scmp.ne.s32.totalorder %s83, %s84
      %p96 = scmp.eq.s32.totalorder %s27, 1
      %p97 = por %p95, %p96
      %p99 = scmp.ne.s32.totalorder %s84, %s98
      %p100 = scmp.eq.s32.totalorder %s27, 0
      %p101 = por %p99, %p100
      %s103 = sadd.s32 %s102, 1
      %p106 = scmp.eq.s32.totalorder %s21, 1
      %p107 = scmp.ne.s32.totalorder %s102, %s104
      %p108 = scmp.eq.s32.totalorder %s21, 0
      %p109 = por %p107, %p108
      %p110 = scmp.ne.s32.totalorder %s102, %s104
      %p111 = scmp.eq.s32.totalorder %s26, 1
      %p112 = por %p110, %p111
      %p113 = scmp.ne.s32.totalorder %s104, %s105
      %p114 = scmp.eq.s32.totalorder %s26, 0
      %p115 = por %p113, %p114
      %p116 = scmp.ne.s32.totalorder %s104, %s105
      %p117 = scmp.eq.s32.totalorder %s27, 1
      %p118 = por %p116, %p117
      %p120 = scmp.ne.s32.totalorder %s105, %s119
      %p121 = scmp.eq.s32.totalorder %s27, 0
      %p122 = por %p120, %p121
      %s124 = sadd.s32 %s123, 1
      %p127 = scmp.eq.s32.totalorder %s21, 1
      %p128 = scmp.ne.s32.totalorder %s123, %s125
      %p129 = scmp.eq.s32.totalorder %s21, 0
      %p130 = por %p128, %p129
      %p131 = scmp.ne.s32.totalorder %s123, %s125
      %p132 = scmp.eq.s32.totalorder %s26, 1
      %p133 = por %p131, %p132
      %p134 = scmp.ne.s32.totalorder %s125, %s126
      %p135 = scmp.eq.s32.totalorder %s26, 0
      %p136 = por %p134, %p135
      %p137 = scmp.ne.s32.totalorder %s125, %s126
      %p138 = scmp.eq.s32.totalorder %s27, 1
      %p139 = por %p137, %p138
      %p141 = scmp.ne.s32.totalorder %s126, %s140
      %p142 = scmp.eq.s32.totalorder %s27, 0
      %p143 = por %p141, %p142
      %s145 = sadd.s32 %s144, 1
      %p148 = scmp.eq.s32.totalorder %s21, 1
      %p149 = scmp.ne.s32.totalorder %s144, %s146
      %p150 = scmp.eq.s32.totalorder %s21, 0
      %p151 = por %p149, %p150
      %p152 = scmp.ne.s32.totalorder %s144, %s146
      %p153 = scmp.eq.s32.totalorder %s26, 1
      %p154 = por %p152, %p153
      %p155 = scmp.ne.s32.totalorder %s146, %s147
      %p156 = scmp.eq.s32.totalorder %s26, 0
      %p157 = por %p155, %p156
      %p158 = scmp.ne.s32.totalorder %s146, %s147
      %p159 = scmp.eq.s32.totalorder %s27, 1
      %p160 = por %p158, %p159
      %p162 = scmp.ne.s32.totalorder %s147, %s161
      %p163 = scmp.eq.s32.totalorder %s27, 0
      %p164 = por %p162, %p163
      %s165 = ssub.s32 %s21, %s28
      %p166 = scmp.eq.s32.totalorder %s165, 0
      %s168 = sadd.s32 %s167, 1
      %s169 = scalar_select %p166, %s167, %s168
      %p172 = pneg %p166
      %p173 = scmp.eq.s32.totalorder %s21, 1
      %p174 = por %p172, %p173
      %p175 = scmp.ne.s32.totalorder %s167, %s170
      %p176 = scmp.eq.s32.totalorder %s21, 0
      %p177 = por %p175, %p176
      %p178 = scmp.ne.s32.totalorder %s167, %s170
      %p179 = scmp.eq.s32.totalorder %s26, 1
      %p180 = por %p178, %p179
      %p181 = scmp.ne.s32.totalorder %s170, %s171
      %p182 = scmp.eq.s32.totalorder %s26, 0
      %p183 = por %p181, %p182
      %p184 = scmp.ne.s32.totalorder %s170, %s171
      %p185 = scmp.eq.s32.totalorder %s27, 1
      %p186 = por %p184, %p185
      %p188 = scmp.ne.s32.totalorder %s171, %s187
      %p189 = scmp.eq.s32.totalorder %s27, 0
      %p190 = por %p188, %p189
      %s191 = ssub.s32 %s21, %s28
      %p192 = scmp.eq.s32.totalorder %s191, 0
      %s194 = sadd.s32 %s193, 1
      %s195 = scalar_select %p192, %s193, %s194
      %p198 = pneg %p192
      %p199 = scmp.eq.s32.totalorder %s21, 1
      %p200 = por %p198, %p199
      %p201 = scmp.ne.s32.totalorder %s193, %s196
      %p202 = scmp.eq.s32.totalorder %s21, 0
      %p203 = por %p201, %p202
      %p204 = scmp.ne.s32.totalorder %s193, %s196
      %p205 = scmp.eq.s32.totalorder %s26, 1
      %p206 = por %p204, %p205
      %p207 = scmp.ne.s32.totalorder %s196, %s197
      %p208 = scmp.eq.s32.totalorder %s26, 0
      %p209 = por %p207, %p208
      %p210 = scmp.ne.s32.totalorder %s196, %s197
      %p211 = scmp.eq.s32.totalorder %s27, 1
      %p212 = por %p210, %p211
      %p214 = scmp.ne.s32.totalorder %s197, %s213
      %p215 = scmp.eq.s32.totalorder %s27, 0
      %p216 = por %p214, %p215
      %p217 = scmp.le.s32.totalorder 1, %s21
      %p218 = scmp.lt.s32.totalorder %s21, 3
      %p219 = pnand %p217, %p218
      %p220 = pneg %p219
      // Predicated region
      $region9: #{tpu_custom_call.1} parent=5 // pred_check
        _
      $region10: #{tpu_custom_call.1} parent=5 // pred_check_branch
        %222 = sbr.rel (%p219) target = $region12
      $region11: #{tpu_custom_call.1} parent=5 // pred_region
        %s223 = ssub.s32 %s21, 1
        // Predicated region
        $region13: #{tpu_custom_call.1} parent=11 // pred_check
          %p224 = pneg %p94
        $region14: #{tpu_custom_call.1} parent=11 // pred_check_branch
          %226 = sbr.rel (%p224) target = $region16
        $region15: #{tpu_custom_call.1} parent=11 // pred_region
          _
        $region16: #{tpu_custom_call.1} parent=11 // pred_fallthru
          _
        // Predicated region
        $region17: #{tpu_custom_call.1} parent=11 // pred_check
          %p227 = pneg %p115
        $region18: #{tpu_custom_call.1} parent=11 // pred_check_branch
          %229 = sbr.rel (%p227) target = $region20
        $region19: #{tpu_custom_call.1} parent=11 // pred_region
          %231 = vsyncadd [#allocation3], 0
          %s232 = sshll.u32 %s3, 4
          %s233 = int_to_ptr.hbm [resolvable:$true] %s232
          %s234 = sshll.u32 [#allocation2], 4
          %s235 = int_to_ptr.vmem [resolvable:$true] %s234
          %240 = dma.hbm_to_vmem [thread:$0]  %s233, 48, %s235, [#allocation3], 16, 16, 1
        $region20: #{tpu_custom_call.1} parent=11 // pred_fallthru
          _
        // Predicated region
        $region21: #{tpu_custom_call.1} parent=11 // pred_check
          %p241 = pneg %p136
        $region22: #{tpu_custom_call.1} parent=11 // pred_check_branch
          %243 = sbr.rel (%p241) target = $region24
        $region23: #{tpu_custom_call.1} parent=11 // pred_region
          _
        $region24: #{tpu_custom_call.1} parent=11 // pred_fallthru
          _
        // Predicated region
        $region25: #{tpu_custom_call.1} parent=11 // pred_check
          %p244 = pneg %p157
        $region26: #{tpu_custom_call.1} parent=11 // pred_check_branch
          %246 = sbr.rel (%p244) target = $region28
        $region27: #{tpu_custom_call.1} parent=11 // pred_region
          _
        $region28: #{tpu_custom_call.1} parent=11 // pred_fallthru
          _
      $region12: #{tpu_custom_call.1} parent=5 // pred_fallthru
        _
      %p247 = scmp.lt.s32.totalorder %s21, 2
      // Predicated region
      $region29: #{tpu_custom_call.1} parent=5 // pred_check
        %p248 = pneg %p247
      $region30: #{tpu_custom_call.1} parent=5 // pred_check_branch
        %250 = sbr.rel (%p248) target = $region32
      $region31: #{tpu_custom_call.1} parent=5 // pred_region
        // Predicated region
        $region33: #{tpu_custom_call.1} parent=31 // pred_check
          %p251 = pneg %p41
        $region34: #{tpu_custom_call.1} parent=31 // pred_check_branch
          %253 = sbr.rel (%p251) target = $region36
        $region35: #{tpu_custom_call.1} parent=31 // pred_region
          %s254 = smul.u32 4, %s21
          %p255 = scmp.lt.s32.totalorder %s254, 7
          %s256 = scalar_select %p255, %s254, 7
          %s257 = smul.addr %s256, 8
          %s258 = scalar_lea.vmem %s0, %s257
          %s259 = smul.u32 4, %s21
        $region36: #{tpu_custom_call.1} parent=31 // pred_fallthru
          _
        // Predicated region
        $region37: #{tpu_custom_call.1} parent=31 // pred_check
          %p260 = pneg %p67
        $region38: #{tpu_custom_call.1} parent=31 // pred_check_branch
          %262 = sbr.rel (%p260) target = $region40
        $region39: #{tpu_custom_call.1} parent=31 // pred_region
          %s263 = smul.u32 4, %s21
          %p264 = scmp.lt.s32.totalorder %s263, 7
          %s265 = scalar_select %p264, %s263, 7
          %s266 = smul.addr %s265, 8
          %s267 = scalar_lea.vmem %s1, %s266
          %s268 = smul.u32 4, %s21
        $region40: #{tpu_custom_call.1} parent=31 // pred_fallthru
          _
      $region32: #{tpu_custom_call.1} parent=5 // pred_fallthru
        _
      %p269 = scmp.le.s32.totalorder 1, %s21
      %p270 = scmp.lt.s32.totalorder %s21, 3
      %p271 = pnand %p269, %p270
      %p272 = pneg %p271
      // Predicated region
      $region41: #{tpu_custom_call.1} parent=5 // pred_check
        _
      $region42: #{tpu_custom_call.1} parent=5 // pred_check_branch
        %274 = sbr.rel (%p271) target = $region44
      $region43: #{tpu_custom_call.1} parent=5 // pred_region
        %s275 = ssub.s32 %s21, 1
        // Predicated region
        $region45: #{tpu_custom_call.1} parent=43 // pred_check
          %p276 = pneg %p115
        $region46: #{tpu_custom_call.1} parent=43 // pred_check_branch
          %278 = sbr.rel (%p276) target = $region48
        $region47: #{tpu_custom_call.1} parent=43 // pred_region
          %280 = dma.done [#allocation3], 48
        $region48: #{tpu_custom_call.1} parent=43 // pred_fallthru
          _
        %s281 = smul.u32 4, %s26
        %p282 = scmp.lt.s32.totalorder %s281, 7
        %s283 = scalar_select %p282, %s281, 7
        %s284 = smul.addr %s283, 8
        %s285 = scalar_lea.vmem %s0, %s284
        %p286 = pneg %p47
        %p287 = pneg %p44
        %s288 = smul.u32 4, %s26
        %p289 = scmp.lt.s32.totalorder %s288, 7
        %s290 = scalar_select %p289, %s288, 7
        %s291 = smul.addr %s290, 8
        %s292 = scalar_lea.vmem %s1, %s291
        %p293 = pneg %p73
        %p294 = pneg %p70
        %p295 = pneg %p94
        %p296 = pneg %p91
        %p297 = pneg %p115
        %p298 = pneg %p112
        %p299 = pneg %p136
        %p300 = pneg %p133
        %p301 = pneg %p157
        %p302 = pneg %p154
        %p303 = pneg %p183
        %p304 = pneg %p180
        %s305 = sand.u32 %s170, 1
        %s306 = scalar_lea.sflag [#allocation4], %s305
        %s307 = sand.u32 %s170, 1
        %s308 = smul.addr %s307, 32
        %s309 = scalar_lea.vmem [#allocation5], %s308
        %p310 = pneg %p209
        %p311 = pneg %p206
        %s312 = sand.u32 %s196, 1
        %s313 = scalar_lea.sflag [#allocation7], %s312
        %s314 = sand.u32 %s196, 1
        %s315 = smul.addr %s314, 32
        %s316 = scalar_lea.vmem [#allocation6], %s315
        %s317 = smul.u32 4, %s26
        %p318 = scmp.lt.s32.totalorder %s317, 7
        %s319 = scalar_select %p318, %s317, 7
        %s320 = smul.addr %s319, 8
        %s321 = scalar_lea.vmem %s0, %s320
        %s322 = smul.u32 4, %s26
        %s323 = smul.u32 4, %s26
        %p324 = scmp.lt.s32.totalorder %s323, 7
        %s325 = scalar_select %p324, %s323, 7
        %s326 = smul.addr %s325, 8
        %s327 = scalar_lea.vmem %s1, %s326
        %s328 = smul.u32 4, %s26
        %s329 = smul.u32 4, %s26
        %s330 = smul.u32 4, %s26
        %v331 = vld [vmem:[%s321] sm:$0xff]
        %v332 = vld [vmem:[%s321 + $0x8] sm:$0xff]
        %v333 = vld [vmem:[%s321 + $0x10] sm:$0xff]
        %v334 = vld [vmem:[%s321 + $0x18] sm:$0xff]
        %v335 = vld [vmem:[%s327] sm:$0xff]
        %v336 = vld [vmem:[%s327 + $0x8] sm:$0xff]
        %v337 = vld [vmem:[%s327 + $0x10] sm:$0xff]
        %v338 = vld [vmem:[%s327 + $0x18] sm:$0xff]
        %v339 = vld [vmem:[%s2] sm:$0xf]
        %vm340 = vcmask 31744
        %v342 = vsel %vm340, %v335, 0
        %v345 = vsel %vm340, %v336, 0
        %v348 = vsel %vm340, %v337, 0
        %v351 = vsel %vm340, %v338, 0
        %vm353 = vcmask 1043456
        %v355 = vsel %vm353, %v339, 0
        %357 = vmatpush.msra.mxu0 0.0
        %358 = vmatpush.msra.mxu0 0.0
        %359 = vmatpush.msra.mxu0 0.0
        %360 = vmatpush.msra.mxu0 0.0
        %361 = vmatpush.msra.mxu0 0.0
        %362 = vmatpush.msra.mxu0 0.0
        %363 = vmatpush.msra.mxu0 0.0
        %364 = vmatpush.msra.mxu0 0.0
        %365 = vmatpush.msra.mxu0 0.0
        %366 = vmatpush.msra.mxu0 0.0
        %367 = vmatpush.msra.mxu0 0.0
        %368 = vmatpush.msra.mxu0 0.0
        %369 = vmatpush.msra.mxu0 0.0
        %370 = vmatpush.msra.mxu0 0.0
        %371 = vmatpush.msra.mxu0 0.0
        %372 = vmatpush.msra.mxu0 %v355
        %373 = vmatmul.f32.gmra.mxu0 %v342
        %v374 = vpop.f32.mrf.mxu0
        %v375 = vadd.f32 0.0, %v374
        %376 = vmatmul.f32.gmra.mxu0 %v345
        %v377 = vpop.f32.mrf.mxu0
        %v378 = vadd.f32 0.0, %v377
        %379 = vmatmul.f32.gmra.mxu0 %v348
        %v380 = vpop.f32.mrf.mxu0
        %v381 = vadd.f32 0.0, %v380
        %382 = vmatmul.f32.gmra.mxu0 %v351
        %v383 = vpop.f32.mrf.mxu0
        %v384 = vadd.f32 0.0, %v383
        %385 = vdwg.mxu0
        %v386 = vld [vmem:[%s5] sm:$0x1]
        %v388 = vperm.slane %v386, 0
        %v390 = vmul.f32 %v388, %v375
        %v391 = vmul.f32 %v388, %v378
        %v392 = vmul.f32 %v388, %v381
        %v393 = vmul.f32 %v388, %v384
        %394 = vst [vmem:[%s316] sm:$0xff] %v390
        %395 = vst [vmem:[%s316 + $0x8] sm:$0xff] %v391
        %396 = vst [vmem:[%s316 + $0x10] sm:$0xff] %v392
        %397 = vst [vmem:[%s316 + $0x18] sm:$0xff] %v393
        %v398 = vmul.f32 %v331, %v375
        %v399 = vmul.f32 %v332, %v378
        %v400 = vmul.f32 %v333, %v381
        %v401 = vmul.f32 %v334, %v384
        %v402 = vld [vmem:[#allocation2] sm:$0x1]
        %v404 = vperm.slane %v402, 0
        %v406 = vmul.f32 %v398, %v404
        %v407 = vmul.f32 %v399, %v404
        %v408 = vmul.f32 %v400, %v404
        %v409 = vmul.f32 %v401, %v404
        %v410 = vld [vmem:[%s4] sm:$0x1]
        %v412 = vperm.slane %v410, 0
        %v414 = vadd.f32 %v406, %v412
        %v415 = vadd.f32 %v407, %v412
        %v416 = vadd.f32 %v408, %v412
        %v417 = vadd.f32 %v409, %v412
        %v418 = vmul.f32 %v414, %v375
        %v419 = vmul.f32 %v415, %v378
        %v420 = vmul.f32 %v416, %v381
        %v421 = vmul.f32 %v417, %v384
        %s422 = scalar_lea.vmem [#allocation2], 1
        %v423 = vld [vmem:[%s422] sm:$0x1]
        %v425 = vperm.slane %v423, 0
        %v427 = vmul.f32 %v418, %v425
        %v428 = vmul.f32 %v419, %v425
        %v429 = vmul.f32 %v420, %v425
        %v430 = vmul.f32 %v421, %v425
        %s431 = scalar_lea.vmem %s4, 1
        %v432 = vld [vmem:[%s431] sm:$0x1]
        %v434 = vperm.slane %v432, 0
        %v436 = vadd.f32 %v427, %v434
        %v437 = vadd.f32 %v428, %v434
        %v438 = vadd.f32 %v429, %v434
        %v439 = vadd.f32 %v430, %v434
        %v440 = vmul.f32 %v436, %v375
        %v441 = vmul.f32 %v437, %v378
        %v442 = vmul.f32 %v438, %v381
        %v443 = vmul.f32 %v439, %v384
        %s444 = scalar_lea.vmem [#allocation2], 2
        %v445 = vld [vmem:[%s444] sm:$0x1]
        %v447 = vperm.slane %v445, 0
        %v449 = vmul.f32 %v440, %v447
        %v450 = vmul.f32 %v441, %v447
        %v451 = vmul.f32 %v442, %v447
        %v452 = vmul.f32 %v443, %v447
        %s453 = scalar_lea.vmem %s4, 2
        %v454 = vld [vmem:[%s453] sm:$0x1]
        %v456 = vperm.slane %v454, 0
        %v458 = vadd.f32 %v449, %v456
        %v459 = vadd.f32 %v450, %v456
        %v460 = vadd.f32 %v451, %v456
        %v461 = vadd.f32 %v452, %v456
        %462 = vst [vmem:[%s309] sm:$0xff] %v458
        %463 = vst [vmem:[%s309 + $0x8] sm:$0xff] %v459
        %464 = vst [vmem:[%s309 + $0x10] sm:$0xff] %v460
        %465 = vst [vmem:[%s309 + $0x18] sm:$0xff] %v461
        %s466 = sand.u32 %s170, 1
        %s467 = scalar_lea.sflag [#allocation4], %s466
        %s468 = sand.u32 %s170, 1
        %s469 = smul.addr %s468, 32
        %s470 = scalar_lea.vmem [#allocation5], %s469
        %s471 = sand.u32 %s196, 1
        %s472 = scalar_lea.sflag [#allocation7], %s471
        %s473 = sand.u32 %s196, 1
        %s474 = smul.addr %s473, 32
        %s475 = scalar_lea.vmem [#allocation6], %s474
        // Predicated region
        $region49: #{tpu_custom_call.1} parent=43 // pred_check
          %p476 = pneg %p180
        $region50: #{tpu_custom_call.1} parent=43 // pred_check_branch
          %478 = sbr.rel (%p476) target = $region52
        $region51: #{tpu_custom_call.1} parent=43 // pred_region
          %s479 = smul.u32 4, %s26
          %481 = vsyncadd %s467, 0
          %s482 = smul.addr %s479, 8
          %s483 = scalar_lea.hbm %s6, %s482
          %s484 = sshll.u32 %s470, 4
          %s485 = int_to_ptr.vmem [resolvable:$true] %s484
          %s486 = sshll.u32 %s483, 4
          %s487 = int_to_ptr.hbm [resolvable:$true] %s486
          %492 = dma.vmem_to_hbm [thread:$0]  %s485, 512, %s487, %s467, 128, 128, 8
        $region52: #{tpu_custom_call.1} parent=43 // pred_fallthru
          _
        // Predicated region
        $region53: #{tpu_custom_call.1} parent=43 // pred_check
          %p493 = pneg %p206
        $region54: #{tpu_custom_call.1} parent=43 // pred_check_branch
          %495 = sbr.rel (%p493) target = $region56
        $region55: #{tpu_custom_call.1} parent=43 // pred_region
          %s496 = smul.u32 4, %s26
          %498 = vsyncadd %s472, 0
          %s499 = smul.addr %s496, 8
          %s500 = scalar_lea.hbm %s7, %s499
          %s501 = sshll.u32 %s475, 4
          %s502 = int_to_ptr.vmem [resolvable:$true] %s501
          %s503 = sshll.u32 %s500, 4
          %s504 = int_to_ptr.hbm [resolvable:$true] %s503
          %509 = dma.vmem_to_hbm [thread:$0]  %s502, 512, %s504, %s472, 128, 128, 8
        $region56: #{tpu_custom_call.1} parent=43 // pred_fallthru
          _
      $region44: #{tpu_custom_call.1} parent=5 // pred_fallthru
        _
      %p510 = scmp.le.s32.totalorder 2, %s21
      // Predicated region
      $region57: #{tpu_custom_call.1} parent=5 // pred_check
        %p511 = pneg %p510
      $region58: #{tpu_custom_call.1} parent=5 // pred_check_branch
        %513 = sbr.rel (%p511) target = $region60
      $region59: #{tpu_custom_call.1} parent=5 // pred_region
        %s514 = ssub.s32 %s21, 2
        // Predicated region
        $region61: #{tpu_custom_call.1} parent=59 // pred_check
          %p515 = pneg %p186
        $region62: #{tpu_custom_call.1} parent=59 // pred_check_branch
          %517 = sbr.rel (%p515) target = $region64
        $region63: #{tpu_custom_call.1} parent=59 // pred_region
          %s518 = sand.u32 %s171, 1
          %s519 = scalar_lea.sflag [#allocation4], %s518
          %s520 = sand.u32 %s171, 1
          %s521 = smul.addr %s520, 32
          %s522 = scalar_lea.vmem [#allocation5], %s521
          %524 = dma.done %s519, 512
        $region64: #{tpu_custom_call.1} parent=59 // pred_fallthru
          _
        // Predicated region
        $region65: #{tpu_custom_call.1} parent=59 // pred_check
          %p525 = pneg %p212
        $region66: #{tpu_custom_call.1} parent=59 // pred_check_branch
          %527 = sbr.rel (%p525) target = $region68
        $region67: #{tpu_custom_call.1} parent=59 // pred_region
          %s528 = sand.u32 %s197, 1
          %s529 = scalar_lea.sflag [#allocation7], %s528
          %s530 = sand.u32 %s197, 1
          %s531 = smul.addr %s530, 32
          %s532 = scalar_lea.vmem [#allocation6], %s531
          %534 = dma.done %s529, 512
        $region68: #{tpu_custom_call.1} parent=59 // pred_fallthru
          _
      $region60: #{tpu_custom_call.1} parent=5 // pred_fallthru
        _
    $region6: #{tpu_custom_call.1} parent=1 // loop_footer
      %s25 = sadd.s32 1, %s21
    $region7: #{tpu_custom_call.1} parent=1 // loop_footer_branch
      %20 = sbr.rel target = $region3
    $region8: #{tpu_custom_call.1} parent=1 // loop_exit
      _
    %535 = vsyncpa [#allocation3], 1
    %s536 = scalar_lea.sflag [#allocation3], 1
    %537 = vsyncpa %s536, 1
    %538 = vsyncpa [#allocation4], 1
    %s539 = scalar_lea.sflag [#allocation4], 1
    %540 = vsyncpa %s539, 1
    %541 = vsyncpa [#allocation7], 1
    %s542 = scalar_lea.sflag [#allocation7], 1
    %543 = vsyncpa %s542, 1

</llo_original>
